<compile_context>
chip_gen: v7x
topology: tpu7x:2x2x1
jax: 0.10.0
libtpu: 0.0.40
codegen_flags: <defaults>
</compile_context>

<pallas_src>
import functools

import jax
import jax.numpy as jnp
from jax.experimental import pallas as pl
from jax.experimental.pallas import tpu as pltpu


# --------------------------------------------------------------------------
# Pallas kernel: one grid iteration == TC LIF-R time steps.
# --------------------------------------------------------------------------
def lif_r_kernel(T, TC, I_ref, w_ref, p_ref, v0_ref, s0_ref, th0_ref,
                 soft_ref, v_ref, s_ref, th_ref):
    # p_ref rows: E_L, G, 1/tau_m, 1/tau_s, (1-b_s), delta_theta_s, f_v,
    #             delta_V, norm_R          -- each (1, Np), broadcast below.
    t = pl.program_id(0)

    # Initialize the resident state carry (output blocks) at the first chunk.
    @pl.when(t == 0)
    def _():
        v_ref[...] = v0_ref[...]
        s_ref[...] = s0_ref[...]
        th_ref[...] = th0_ref[...]

    Bp, Np = v_ref.shape
    shape = (Bp, Np)

    # Loop-invariant parameter rows: broadcast ONCE per chunk (hoisted out of
    # the inner time loop — JAX does not CSE broadcast_in_dim).
    def row(i):
        return jnp.broadcast_to(p_ref[i:i + 1, :], shape)

    E_L = row(0)
    G = row(1)
    inv_tau_m = row(2)
    inv_tau_s = row(3)
    one_m_b_s = row(4)
    dth = row(5)
    f_v = row(6)
    dV = row(7)
    normR = row(8)

    if T % TC == 0:
        n_steps = TC                              # static trip count
        unroll = TC <= 8
    else:
        n_steps = jnp.minimum(TC, T - t * TC)     # ragged final chunk
        unroll = False

    @pl.loop(0, n_steps, unroll=unroll)
    def _(i):
        v = v_ref[...]          # (Bp, Np)  old state (resident in VMEM)
        s = s_ref[...]
        th = th_ref[...]
        I_ext = I_ref[i]        # (Bp, Np)  this time-step's external input

        # Synaptic current on the MXU (pre-masked weights, resident in VMEM).
        I_syn = jnp.dot(s, w_ref[...], preferred_element_type=jnp.float32)

        dv = (G * (E_L - v) + (I_syn + I_ext) * normR) * inv_tau_m
        v_next = v + dv

        # Divides by the dynamic theta_s kept exact (faithful to the module).
        gating = jnp.clip(v_next / th, 0.0, 1.0)
        ds = (-s + gating * jnp.clip(dv / (th - E_L), 0.0, 1.0)) * inv_tau_s

        spike = v_next >= th
        th_decay = one_m_b_s * th
        th_new = jnp.where(spike, th_decay + dth, th_decay)
        v_reset = E_L + f_v * (v - E_L) - dV

        # theta_s is updated before the soft spike (matches the PyTorch order).
        soft_ref[i] = jax.nn.sigmoid(v_next - th_new)
        v_ref[...] = jnp.where(spike, v_reset, v_next)
        s_ref[...] = s + ds
        th_ref[...] = th_new


# --------------------------------------------------------------------------
# Wrapper: fold/pad parameters, run the fused T-step pallas_call.
# --------------------------------------------------------------------------
def _round_up(x, m):
    return (x + m - 1) // m * m


def lif_r_simulate(I_ext_seq, v0, s0, theta_s0, w_eff,
                   E_L, G, tau_m, tau_s, b_s, delta_theta_s, f_v, delta_V,
                   norm_R, time_chunk=32):
    """Run T LIF-R steps for B independent trajectories sharing one weight matrix.

    I_ext_seq: (T, B, N) f32   external input per step
    v0/s0/theta_s0: (B, N)     initial state
    w_eff: (N, N)              pre-masked weights (w * neuron_types * (1 - I))
    parameter vectors: (N,)
    Returns (soft_spiked (T,B,N), v (B,N), s (B,N), theta_s (B,N)).
    """
    T, B, N = I_ext_seq.shape
    Np = max(_round_up(N, 128), 128)   # lane-dense neuron axis
    Bp = max(_round_up(B, 8), 8)       # sublane-full batch axis
    TC = max(1, min(int(time_chunk), T))
    n_chunks = (T + TC - 1) // TC
    T_pad = n_chunks * TC
    f32 = jnp.float32

    # ---- host-side parameter folding (reciprocals, 1-b_s) + safe padding ----
    def pad_row(x, fill):
        return jnp.full((Np,), fill, f32).at[:N].set(x.astype(f32))

    params = jnp.stack([
        pad_row(E_L, 0.0),
        pad_row(G, 0.0),
        pad_row(1.0 / tau_m, 1.0),
        pad_row(1.0 / tau_s, 1.0),
        pad_row(1.0 - b_s, 1.0),
        pad_row(delta_theta_s, 0.0),
        pad_row(f_v, 0.0),
        pad_row(delta_V, 0.0),
        pad_row(norm_R, 0.0),
    ], axis=0)                                                    # (9, Np)

    Wp = jnp.zeros((Np, Np), f32).at[:N, :N].set(w_eff.astype(f32))
    Ip = jnp.zeros((T_pad, Bp, Np), f32).at[:T, :B, :N].set(I_ext_seq.astype(f32))
    v0p = jnp.zeros((Bp, Np), f32).at[:B, :N].set(v0.astype(f32))
    s0p = jnp.zeros((Bp, Np), f32).at[:B, :N].set(s0.astype(f32))
    th0p = jnp.ones((Bp, Np), f32).at[:B, :N].set(theta_s0.astype(f32))

    # ---- specs: I / soft stream per chunk; W, params, state stay resident ----
    seq_spec = pl.BlockSpec((TC, Bp, Np), lambda t: (t, 0, 0))
    state_spec = pl.BlockSpec((Bp, Np), lambda t: (0, 0))
    mat_spec = pl.BlockSpec((Np, Np), lambda t: (0, 0))
    par_spec = pl.BlockSpec((9, Np), lambda t: (0, 0))

    out_shape = (jax.ShapeDtypeStruct((T_pad, Bp, Np), f32),   # soft spikes
                 jax.ShapeDtypeStruct((Bp, Np), f32),          # final v
                 jax.ShapeDtypeStruct((Bp, Np), f32),          # final s
                 jax.ShapeDtypeStruct((Bp, Np), f32))          # final theta_s

    flops = T * (2 * Bp * Np * Np + 30 * Bp * Np)
    transcendentals = T * Bp * Np * 3              # sigmoid + 2 dynamic divides
    bytes_accessed = (Np * Np * 4 + 9 * Np * 4
                      + 2 * T_pad * Bp * Np * 4    # I in + soft out
                      + 6 * Bp * Np * 4)           # state in + out

    kernel = functools.partial(lif_r_kernel, T, TC)

    soft, v_f, s_f, th_f = pl.pallas_call(
        kernel,
        out_shape=out_shape,
        grid=(n_chunks,),
        in_specs=[seq_spec, mat_spec, par_spec,
                  state_spec, state_spec, state_spec],
        out_specs=(seq_spec, state_spec, state_spec, state_spec),
        compiler_params=pltpu.CompilerParams(
            dimension_semantics=("arbitrary",),     # sequential recurrence
            vmem_limit_bytes=32 * 1024 * 1024),
        cost_estimate=pl.CostEstimate(flops=flops,
                                      transcendentals=transcendentals,
                                      bytes_accessed=bytes_accessed),
    )(Ip, Wp, params, v0p, s0p, th0p)

    return (soft[:T, :B, :N], v_f[:B, :N], s_f[:B, :N], th_f[:B, :N])


# --------------------------------------------------------------------------
# Pure-JAX reference: faithful mirror of the PyTorch forward, looped over T.
# --------------------------------------------------------------------------
def lif_r_reference(I_ext_seq, v0, s0, th0, w_eff,
                    E_L, G, tau_m, tau_s, b_s, delta_theta_s, f_v, delta_V,
                    norm_R):
    def step(carry, I_ext):
        v, s, th = carry
        I_syn = s @ w_eff
        dv = (G * (E_L - v) + (I_syn + I_ext) * norm_R) / tau_m
        v_next = v + dv
        gating = jnp.clip(v_next / th, 0.0, 1.0)
        dv_max = th - E_L
        ds = (-s + gating * jnp.clip(dv / dv_max, 0.0, 1.0)) / tau_s
        s_new = s + ds
        spiked = (v_next >= th).astype(jnp.float32)
        not_spiked = (spiked - 1.0) / -1.0
        th_new = (1.0 - b_s) * th + spiked * delta_theta_s
        v_reset = E_L + f_v * (v - E_L) - delta_V
        v_new = spiked * v_reset + not_spiked * v_next
        soft = jax.nn.sigmoid(v_next - th_new)
        return (v_new, s_new, th_new), soft

    (v_f, s_f, th_f), softs = jax.lax.scan(step, (v0, s0, th0), I_ext_seq)
    return softs, v_f, s_f, th_f


if __name__ == "__main__":
    # N = module default; B batched trajectories; T not a multiple of the time
    # chunk so the ragged-final-chunk path is exercised too.
    N, B, T = 12, 8, 20
    key = jax.random.PRNGKey(0)
    k_w, k_I = jax.random.split(key)

    # ---- deterministic parameters (midpoints of parameter_init_intervals) ----
    ones = jnp.ones((N,), jnp.float32)
    E_L = jnp.clip(ones * -59.5, -80.0, -35.0)
    tau_m = jnp.clip(ones * 3.75, 1.5, 8.0)
    G = ones * 0.75
    f_v = jnp.clip(ones * 0.30, 0.01, 0.99)
    delta_theta_s = jnp.clip(ones * 15.0, 6.0, 30.0)
    b_s = jnp.clip(ones * 0.30, 0.01, 0.99)
    delta_V = jnp.clip(ones * 11.0, 1.0, 35.0)
    tau_s = jnp.clip(ones * 5.5, 1.0, 12.0)
    norm_R = (delta_theta_s - E_L) * 1.1

    # ---- weights: w_mean - w_var + 2*w_var*U[0,1)
    w_mean, w_var = 0.4, 0.25
    w = w_mean - w_var + 2.0 * w_var * jax.random.uniform(k_w, (N, N), jnp.float32)

    # ---- neuron types (alternating excitatory / inhibitory) + self-rec mask,
    #      folded ONCE outside the kernel.
    nt = jnp.where(jnp.arange(N) % 2 == 0, 1.0, -1.0).astype(jnp.float32)
    neuron_types_mat = jnp.transpose(nt * jnp.ones((N, N), jnp.float32))
    self_rec_mask = jnp.ones((N, N), jnp.float32) - jnp.eye(N, dtype=jnp.float32)
    w_eff = w * neuron_types_mat * self_rec_mask

    # ---- initial state (as in __init__): v = 0, s = 0, theta_s = delta_theta_s
    v0 = jnp.zeros((B, N), jnp.float32)
    s0 = jnp.zeros((B, N), jnp.float32)
    th0 = jnp.broadcast_to(delta_theta_s, (B, N)).astype(jnp.float32)

    # ---- external input sequence (T steps, B independent trajectories)
    I_ext_seq = jax.random.normal(k_I, (T, B, N), jnp.float32)

    sim = jax.jit(functools.partial(lif_r_simulate, time_chunk=8))
    out = sim(I_ext_seq, v0, s0, th0, w_eff,
              E_L, G, tau_m, tau_s, b_s, delta_theta_s, f_v, delta_V, norm_R)
    out = jax.block_until_ready(out)
    soft, v_f, s_f, th_f = out

    # ---- verify against the pure-JAX mirror of the PyTorch forward
    ref = lif_r_reference(I_ext_seq, v0, s0, th0, w_eff,
                          E_L, G, tau_m, tau_s, b_s, delta_theta_s, f_v,
                          delta_V, norm_R)
    for name, got, want in zip(("soft", "v", "s", "theta_s"),
                               (soft, v_f, s_f, th_f), ref):
        assert got.shape == want.shape, (name, got.shape, want.shape)
        assert jnp.allclose(got, want, atol=5e-3, rtol=5e-3), (name, got, want)

    print("KERNEL_OK")
</pallas_src>

<mosaic_0001>
module attributes {stable_mosaic.version = 11 : i64} {
  func.func @lif_r_kernel(%arg0: i32, %arg1: memref<8x8x128xf32, #tpu.memory_space<vmem>>, %arg2: memref<128x128xf32, #tpu.memory_space<vmem>>, %arg3: memref<9x128xf32, #tpu.memory_space<vmem>>, %arg4: memref<8x128xf32, #tpu.memory_space<vmem>>, %arg5: memref<8x128xf32, #tpu.memory_space<vmem>>, %arg6: memref<8x128xf32, #tpu.memory_space<vmem>>, %arg7: memref<8x8x128xf32, #tpu.memory_space<vmem>>, %arg8: memref<8x128xf32, #tpu.memory_space<vmem>>, %arg9: memref<8x128xf32, #tpu.memory_space<vmem>>, %arg10: memref<8x128xf32, #tpu.memory_space<vmem>>) attributes {dimension_semantics = [#tpu.dimension_semantics<arbitrary>], iteration_bounds = array<i64: 3>, scalar_prefetch = 0 : i64, scratch_operands = 0 : i64, tpu.core_type = #tpu.core_type<tc>, window_params = [{transform_indices = @transform_0, window_bounds = array<i64: 8, 8, 128>}, {pipeline_mode = #tpu.pipeline_mode<synchronous>, transform_indices = @transform_1, window_bounds = array<i64: 128, 128>}, {pipeline_mode = #tpu.pipeline_mode<synchronous>, transform_indices = @transform_2, window_bounds = array<i64: 9, 128>}, {pipeline_mode = #tpu.pipeline_mode<synchronous>, transform_indices = @transform_3, window_bounds = array<i64: 8, 128>}, {pipeline_mode = #tpu.pipeline_mode<synchronous>, transform_indices = @transform_4, window_bounds = array<i64: 8, 128>}, {pipeline_mode = #tpu.pipeline_mode<synchronous>, transform_indices = @transform_5, window_bounds = array<i64: 8, 128>}, {transform_indices = @transform_6, window_bounds = array<i64: 8, 8, 128>}, {pipeline_mode = #tpu.pipeline_mode<synchronous>, transform_indices = @transform_7, window_bounds = array<i64: 8, 128>}, {pipeline_mode = #tpu.pipeline_mode<synchronous>, transform_indices = @transform_8, window_bounds = array<i64: 8, 128>}, {pipeline_mode = #tpu.pipeline_mode<synchronous>, transform_indices = @transform_9, window_bounds = array<i64: 8, 128>}]} {
    %c0_i32 = arith.constant 0 : i32
    %0 = arith.cmpi eq, %arg0, %c0_i32 : i32
    %1 = arith.extui %0 : i1 to i32
    %c0_i32_0 = arith.constant 0 : i32
    %2 = arith.cmpi ne, %1, %c0_i32_0 : i32
    scf.if %2 {
      %c0_18 = arith.constant 0 : index
      %c0_19 = arith.constant 0 : index
      %39 = vector.load %arg4[%c0_18, %c0_19] : memref<8x128xf32, #tpu.memory_space<vmem>>, vector<8x128xf32>
      %c0_20 = arith.constant 0 : index
      %c0_21 = arith.constant 0 : index
      %40 = vector.load %arg8[%c0_20, %c0_21] : memref<8x128xf32, #tpu.memory_space<vmem>>, vector<8x128xf32>
      tpu.vector_store %arg8[%c0_20, %c0_21], %39 {strides = array<i32>} : memref<8x128xf32, #tpu.memory_space<vmem>>, vector<8x128xf32>,
      %c0_22 = arith.constant 0 : index
      %c0_23 = arith.constant 0 : index
      %41 = vector.load %arg5[%c0_22, %c0_23] : memref<8x128xf32, #tpu.memory_space<vmem>>, vector<8x128xf32>
      %c0_24 = arith.constant 0 : index
      %c0_25 = arith.constant 0 : index
      %42 = vector.load %arg9[%c0_24, %c0_25] : memref<8x128xf32, #tpu.memory_space<vmem>>, vector<8x128xf32>
      tpu.vector_store %arg9[%c0_24, %c0_25], %41 {strides = array<i32>} : memref<8x128xf32, #tpu.memory_space<vmem>>, vector<8x128xf32>,
      %c0_26 = arith.constant 0 : index
      %c0_27 = arith.constant 0 : index
      %43 = vector.load %arg6[%c0_26, %c0_27] : memref<8x128xf32, #tpu.memory_space<vmem>>, vector<8x128xf32>
      %c0_28 = arith.constant 0 : index
      %c0_29 = arith.constant 0 : index
      %44 = vector.load %arg10[%c0_28, %c0_29] : memref<8x128xf32, #tpu.memory_space<vmem>>, vector<8x128xf32>
      tpu.vector_store %arg10[%c0_28, %c0_29], %43 {strides = array<i32>} : memref<8x128xf32, #tpu.memory_space<vmem>>, vector<8x128xf32>,
    } else {
    }
    %c0 = arith.constant 0 : index
    %c0_1 = arith.constant 0 : index
    %3 = vector.load %arg3[%c0, %c0_1] : memref<9x128xf32, #tpu.memory_space<vmem>>, vector<1x128xf32>
    %4 = vector.shape_cast %3 : vector<1x128xf32> to vector<1x128xf32>
    %5 = vector.broadcast %4 : vector<1x128xf32> to vector<8x128xf32>
    %c1 = arith.constant 1 : index
    %c0_2 = arith.constant 0 : index
    %6 = vector.load %arg3[%c1, %c0_2] : memref<9x128xf32, #tpu.memory_space<vmem>>, vector<1x128xf32>
    %7 = vector.shape_cast %6 : vector<1x128xf32> to vector<1x128xf32>
    %8 = vector.broadcast %7 : vector<1x128xf32> to vector<8x128xf32>
    %c2 = arith.constant 2 : index
    %c0_3 = arith.constant 0 : index
    %9 = vector.load %arg3[%c2, %c0_3] : memref<9x128xf32, #tpu.memory_space<vmem>>, vector<1x128xf32>
    %10 = vector.shape_cast %9 : vector<1x128xf32> to vector<1x128xf32>
    %11 = vector.broadcast %10 : vector<1x128xf32> to vector<8x128xf32>
    %c3 = arith.constant 3 : index
    %c0_4 = arith.constant 0 : index
    %12 = vector.load %arg3[%c3, %c0_4] : memref<9x128xf32, #tpu.memory_space<vmem>>, vector<1x128xf32>
    %13 = vector.shape_cast %12 : vector<1x128xf32> to vector<1x128xf32>
    %14 = vector.broadcast %13 : vector<1x128xf32> to vector<8x128xf32>
    %c4 = arith.constant 4 : index
    %c0_5 = arith.constant 0 : index
    %15 = vector.load %arg3[%c4, %c0_5] : memref<9x128xf32, #tpu.memory_space<vmem>>, vector<1x128xf32>
    %16 = vector.shape_cast %15 : vector<1x128xf32> to vector<1x128xf32>
    %17 = vector.broadcast %16 : vector<1x128xf32> to vector<8x128xf32>
    %c5 = arith.constant 5 : index
    %c0_6 = arith.constant 0 : index
    %18 = vector.load %arg3[%c5, %c0_6] : memref<9x128xf32, #tpu.memory_space<vmem>>, vector<1x128xf32>
    %19 = vector.shape_cast %18 : vector<1x128xf32> to vector<1x128xf32>
    %20 = vector.broadcast %19 : vector<1x128xf32> to vector<8x128xf32>
    %c6 = arith.constant 6 : index
    %c0_7 = arith.constant 0 : index
    %21 = vector.load %arg3[%c6, %c0_7] : memref<9x128xf32, #tpu.memory_space<vmem>>, vector<1x128xf32>
    %22 = vector.shape_cast %21 : vector<1x128xf32> to vector<1x128xf32>
    %23 = vector.broadcast %22 : vector<1x128xf32> to vector<8x128xf32>
    %c7 = arith.constant 7 : index
    %c0_8 = arith.constant 0 : index
    %24 = vector.load %arg3[%c7, %c0_8] : memref<9x128xf32, #tpu.memory_space<vmem>>, vector<1x128xf32>
    %25 = vector.shape_cast %24 : vector<1x128xf32> to vector<1x128xf32>
    %26 = vector.broadcast %25 : vector<1x128xf32> to vector<8x128xf32>
    %c8 = arith.constant 8 : index
    %c0_9 = arith.constant 0 : index
    %27 = vector.load %arg3[%c8, %c0_9] : memref<9x128xf32, #tpu.memory_space<vmem>>, vector<1x128xf32>
    %28 = vector.shape_cast %27 : vector<1x128xf32> to vector<1x128xf32>
    %29 = vector.broadcast %28 : vector<1x128xf32> to vector<8x128xf32>
    %c8_i32 = arith.constant 8 : i32
    %30 = arith.muli %arg0, %c8_i32 : i32
    %c20_i32 = arith.constant 20 : i32
    %31 = arith.subi %c20_i32, %30 : i32
    %c8_i32_10 = arith.constant 8 : i32
    %32 = arith.minsi %c8_i32_10, %31 : i32
    %c0_i32_11 = arith.constant 0 : i32
    %33 = arith.subi %32, %c0_i32_11 : i32
    %c1_i32 = arith.constant 1 : i32
    %c1_i32_12 = arith.constant 1 : i32
    %34 = arith.subi %c1_i32, %c1_i32_12 : i32
    %35 = arith.addi %33, %34 : i32
    %c1_i32_13 = arith.constant 1 : i32
    %36 = arith.divsi %35, %c1_i32_13 : i32
    %c1_i32_14 = arith.constant 1 : i32
    %c0_i32_15 = arith.constant 0 : i32
    %c0_i32_16 = arith.constant 0 : i32
    %37 = arith.subi %36, %c0_i32_16 : i32
    %38 = arith.addi %c0_i32_16, %37 : i32
    %c1_i32_17 = arith.constant 1 : i32
    scf.for %arg11 = %c0_i32_16 to %38 step %c1_i32_17  : i32 {
      %39 = arith.muli %arg11, %c1_i32_14 : i32
      %40 = arith.addi %c0_i32_15, %39 : i32
      %c0_18 = arith.constant 0 : index
      %c0_19 = arith.constant 0 : index
      %41 = vector.load %arg8[%c0_18, %c0_19] : memref<8x128xf32, #tpu.memory_space<vmem>>, vector<8x128xf32>
      %c0_20 = arith.constant 0 : index
      %c0_21 = arith.constant 0 : index
      %42 = vector.load %arg9[%c0_20, %c0_21] : memref<8x128xf32, #tpu.memory_space<vmem>>, vector<8x128xf32>
      %c0_22 = arith.constant 0 : index
      %c0_23 = arith.constant 0 : index
      %43 = vector.load %arg10[%c0_22, %c0_23] : memref<8x128xf32, #tpu.memory_space<vmem>>, vector<8x128xf32>
      %44 = arith.index_cast %40 : i32 to index
      %c0_24 = arith.constant 0 : index
      %c0_25 = arith.constant 0 : index
      %45 = vector.load %arg1[%44, %c0_24, %c0_25] : memref<8x8x128xf32, #tpu.memory_space<vmem>>, vector<1x8x128xf32>
      %46 = vector.shape_cast %45 : vector<1x8x128xf32> to vector<8x128xf32>
      %c0_26 = arith.constant 0 : index
      %c0_27 = arith.constant 0 : index
      %47 = vector.load %arg2[%c0_26, %c0_27] : memref<128x128xf32, #tpu.memory_space<vmem>>, vector<128x128xf32>
      %cst = arith.constant dense<0.000000e+00> : vector<8x128xf32>
      %48 = tpu.matmul %42, %47, %cst {dimension_numbers = #tpu.dot_dimension_numbers<[1], [0], [0], [1], [0, 0, 1, 1], [], []>} : vector<8x128xf32>, vector<128x128xf32>, vector<8x128xf32> -> vector<8x128xf32>
      %49 = arith.subf %5, %41 : vector<8x128xf32>
      %50 = arith.mulf %8, %49 : vector<8x128xf32>
      %51 = arith.addf %48, %46 : vector<8x128xf32>
      %52 = arith.mulf %51, %29 : vector<8x128xf32>
      %53 = arith.addf %50, %52 : vector<8x128xf32>
      %54 = arith.mulf %53, %11 : vector<8x128xf32>
      %55 = arith.addf %41, %54 : vector<8x128xf32>
      %56 = arith.divf %55, %43 : vector<8x128xf32>
      %cst_28 = arith.constant 0.000000e+00 : f32
      %cst_29 = arith.constant 1.000000e+00 : f32
      %57 = vector.broadcast %cst_28 : f32 to vector<8x128xf32>
      %58 = arith.maximumf %57, %56 : vector<8x128xf32>
      %59 = vector.broadcast %cst_29 : f32 to vector<8x128xf32>
      %60 = arith.minimumf %59, %58 : vector<8x128xf32>
      %cst_30 = arith.constant 0.000000e+00 : f32
      %61 = vector.broadcast %cst_30 : f32 to vector<8x128xf32>
      %62 = arith.subf %61, %42 : vector<8x128xf32>
      %63 = arith.subf %43, %5 : vector<8x128xf32>
      %64 = arith.divf %54, %63 : vector<8x128xf32>
      %cst_31 = arith.constant 0.000000e+00 : f32
      %cst_32 = arith.constant 1.000000e+00 : f32
      %65 = vector.broadcast %cst_31 : f32 to vector<8x128xf32>
      %66 = arith.maximumf %65, %64 : vector<8x128xf32>
      %67 = vector.broadcast %cst_32 : f32 to vector<8x128xf32>
      %68 = arith.minimumf %67, %66 : vector<8x128xf32>
      %69 = arith.mulf %60, %68 : vector<8x128xf32>
      %70 = arith.addf %62, %69 : vector<8x128xf32>
      %71 = arith.mulf %70, %14 : vector<8x128xf32>
      %72 = arith.cmpf oge, %55, %43 : vector<8x128xf32>
      %73 = arith.mulf %17, %43 : vector<8x128xf32>
      %74 = arith.addf %73, %20 : vector<8x128xf32>
      %75 = arith.select %72, %74, %73 : vector<8x128xi1>, vector<8x128xf32>
      %76 = arith.subf %41, %5 : vector<8x128xf32>
      %77 = arith.mulf %23, %76 : vector<8x128xf32>
      %78 = arith.addf %5, %77 : vector<8x128xf32>
      %79 = arith.subf %78, %26 : vector<8x128xf32>
      %80 = arith.subf %55, %75 : vector<8x128xf32>
      %81 = arith.negf %80 : vector<8x128xf32>
      %82 = math.exp %81 : vector<8x128xf32>
      %cst_33 = arith.constant 1.000000e+00 : f32
      %83 = vector.broadcast %cst_33 : f32 to vector<8x128xf32>
      %84 = arith.addf %83, %82 : vector<8x128xf32>
      %85 = arith.divf %83, %84 : vector<8x128xf32>
      %86 = arith.index_cast %40 : i32 to index
      %c0_34 = arith.constant 0 : index
      %c0_35 = arith.constant 0 : index
      %87 = vector.load %arg7[%86, %c0_34, %c0_35] : memref<8x8x128xf32, #tpu.memory_space<vmem>>, vector<1x8x128xf32>
      %88 = vector.shape_cast %87 : vector<1x8x128xf32> to vector<8x128xf32>
      %89 = vector.shape_cast %85 : vector<8x128xf32> to vector<1x8x128xf32>
      tpu.vector_store %arg7[%86, %c0_34, %c0_35], %89 {strides = array<i32>} : memref<8x8x128xf32, #tpu.memory_space<vmem>>, vector<1x8x128xf32>,
      %90 = arith.select %72, %79, %55 : vector<8x128xi1>, vector<8x128xf32>
      %c0_36 = arith.constant 0 : index
      %c0_37 = arith.constant 0 : index
      %91 = vector.load %arg8[%c0_36, %c0_37] : memref<8x128xf32, #tpu.memory_space<vmem>>, vector<8x128xf32>
      tpu.vector_store %arg8[%c0_36, %c0_37], %90 {strides = array<i32>} : memref<8x128xf32, #tpu.memory_space<vmem>>, vector<8x128xf32>,
      %92 = arith.addf %42, %71 : vector<8x128xf32>
      %c0_38 = arith.constant 0 : index
      %c0_39 = arith.constant 0 : index
      %93 = vector.load %arg9[%c0_38, %c0_39] : memref<8x128xf32, #tpu.memory_space<vmem>>, vector<8x128xf32>
      tpu.vector_store %arg9[%c0_38, %c0_39], %92 {strides = array<i32>} : memref<8x128xf32, #tpu.memory_space<vmem>>, vector<8x128xf32>,
      %c0_40 = arith.constant 0 : index
      %c0_41 = arith.constant 0 : index
      %94 = vector.load %arg10[%c0_40, %c0_41] : memref<8x128xf32, #tpu.memory_space<vmem>>, vector<8x128xf32>
      tpu.vector_store %arg10[%c0_40, %c0_41], %75 {strides = array<i32>} : memref<8x128xf32, #tpu.memory_space<vmem>>, vector<8x128xf32>,
    }
    return
  }
  func.func @transform_0(%arg0: i32) -> (i32, i32, i32) {
    %c0_i32 = arith.constant 0 : i32
    %c0_i32_0 = arith.constant 0 : i32
    %c0_i32_1 = arith.constant 0 : i32
    return %arg0, %c0_i32, %c0_i32_0 : i32, i32, i32
  }
  func.func @transform_1(%arg0: i32) -> (i32, i32) {
    %c0_i32 = arith.constant 0 : i32
    %c0_i32_0 = arith.constant 0 : i32
    %c0_i32_1 = arith.constant 0 : i32
    return %c0_i32, %c0_i32_0 : i32, i32
  }
  func.func @transform_2(%arg0: i32) -> (i32, i32) {
    %c0_i32 = arith.constant 0 : i32
    %c0_i32_0 = arith.constant 0 : i32
    %c0_i32_1 = arith.constant 0 : i32
    return %c0_i32, %c0_i32_0 : i32, i32
  }
  func.func @transform_3(%arg0: i32) -> (i32, i32) {
    %c0_i32 = arith.constant 0 : i32
    %c0_i32_0 = arith.constant 0 : i32
    %c0_i32_1 = arith.constant 0 : i32
    return %c0_i32, %c0_i32_0 : i32, i32
  }
  func.func @transform_4(%arg0: i32) -> (i32, i32) {
    %c0_i32 = arith.constant 0 : i32
    %c0_i32_0 = arith.constant 0 : i32
    %c0_i32_1 = arith.constant 0 : i32
    return %c0_i32, %c0_i32_0 : i32, i32
  }
  func.func @transform_5(%arg0: i32) -> (i32, i32) {
    %c0_i32 = arith.constant 0 : i32
    %c0_i32_0 = arith.constant 0 : i32
    %c0_i32_1 = arith.constant 0 : i32
    return %c0_i32, %c0_i32_0 : i32, i32
  }
  func.func @transform_6(%arg0: i32) -> (i32, i32, i32) {
    %c0_i32 = arith.constant 0 : i32
    %c0_i32_0 = arith.constant 0 : i32
    %c0_i32_1 = arith.constant 0 : i32
    return %arg0, %c0_i32, %c0_i32_0 : i32, i32, i32
  }
  func.func @transform_7(%arg0: i32) -> (i32, i32) {
    %c0_i32 = arith.constant 0 : i32
    %c0_i32_0 = arith.constant 0 : i32
    %c0_i32_1 = arith.constant 0 : i32
    return %c0_i32, %c0_i32_0 : i32, i32
  }
  func.func @transform_8(%arg0: i32) -> (i32, i32) {
    %c0_i32 = arith.constant 0 : i32
    %c0_i32_0 = arith.constant 0 : i32
    %c0_i32_1 = arith.constant 0 : i32
    return %c0_i32, %c0_i32_0 : i32, i32
  }
  func.func @transform_9(%arg0: i32) -> (i32, i32) {
    %c0_i32 = arith.constant 0 : i32
    %c0_i32_0 = arith.constant 0 : i32
    %c0_i32_1 = arith.constant 0 : i32
    return %c0_i32, %c0_i32_0 : i32, i32
  }
}

</mosaic_0001>

<llo_original>
// kernel: lif_r_simulate.1
$region0: #{lif_r_simulate.1}
  #allocation0 [shape = 'u32[]', space=smem, size = 0x4, offset = 0x4, fixed_abs, tag = 'smem constant byte address 0x4 - core index']
  #allocation1 [shape = 'u32[144,128]{1,0:T(1,128)}', space=vmem, size = 0x12000, scoped, tag = 'internal scratch']
  %s0 = inlined_call_operand.vmem [shape: f32[24,8,128], index: 0, kind: input, shape index: {}]
  %s1 = inlined_call_operand.vmem [shape: f32[128,128], index: 1, kind: input, shape index: {}]
  %s2 = inlined_call_operand.vmem [shape: f32[9,128], index: 2, kind: input, shape index: {}]
  %s3 = inlined_call_operand.vmem [shape: f32[8,128], index: 3, kind: input, shape index: {}]
  %s4 = inlined_call_operand.vmem [shape: f32[8,128], index: 4, kind: input, shape index: {}]
  %s5 = inlined_call_operand.vmem [shape: f32[8,128], index: 5, kind: input, shape index: {}]
  %s6 = inlined_call_operand.vmem [shape: f32[24,8,128], index: 6, kind: output, shape index: {0}]
  %s7 = inlined_call_operand.hbm [shape: f32[8,128], index: 7, kind: output, shape index: {1}]
  %s8 = inlined_call_operand.hbm [shape: f32[8,128], index: 8, kind: output, shape index: {2}]
  %s9 = inlined_call_operand.hbm [shape: f32[8,128], index: 9, kind: output, shape index: {3}]
  %10 = xla_tuple %s6, %s7, %s8, %s9
  %s11 = sld [smem:[#allocation0]]
  $region92: #{lif_r_simulate.1} parent=0
    _
  %s13 = ssub.s32 1, %s11
  %s14 = scalar_select 0, %s13, %s11
  $region1: #{lif_r_simulate.1} parent=0
    #allocation2 [shape = 'u8[4096]{0}', space=vmem, size = 0x1000, scoped, tag = 'output window, operand 1, single buffered']
    #allocation3 [shape = 's32[2]{0}', space=sflag, size = 0x8, scoped, tag = 'scoped memory for lif_r_simulate.1']
    #allocation4 [shape = 'u8[4096]{0}', space=vmem, size = 0x1000, scoped, tag = 'output window, operand 2, single buffered']
    #allocation5 [shape = 's32[1]{0}', space=sflag, size = 0x4, scoped, tag = 'scoped memory for lif_r_simulate.1']
    #allocation6 [shape = 'u8[4096]{0}', space=vmem, size = 0x1000, scoped, tag = 'output window, operand 3, single buffered']
    %15 = vsyncpa [#allocation3], 0
    %16 = vsyncpa [#allocation5], 0
    loop: start=0, step=1, limit=5
    $region2: #{lif_r_simulate.1} parent=1 // loop_pre_header
      _
    $region3: #{lif_r_simulate.1} parent=1 // loop_header
      %s18 = sphi 0, %s22
      %p19 = scmp.ge.s32.totalorder %s18, 5
      %s28 = sphi 0, %s30
      %s31 = sphi 0, %s28
      %s32 = sphi 0, %s31
      %s48 = sphi 0, %s32
      %s52 = sphi 0, %s52
      %s54 = sphi 0, %s52
      %s55 = sphi 0, %s54
      %s69 = sphi 0, %s55
      %s73 = sphi 0, %s73
      %s75 = sphi 0, %s73
      %s76 = sphi 0, %s75
      %s90 = sphi 0, %s76
      %s94 = sphi 0, %s94
      %s96 = sphi 0, %s94
      %s97 = sphi 0, %s96
      %s111 = sphi 0, %s97
      %s115 = sphi 0, %s115
      %s117 = sphi 0, %s115
      %s118 = sphi 0, %s117
      %s132 = sphi 0, %s118
      %s136 = sphi 0, %s136
      %s138 = sphi 0, %s136
      %s139 = sphi 0, %s138
      %s153 = sphi 0, %s139
      %s159 = sphi 0, %s161
      %s162 = sphi 0, %s159
      %s163 = sphi 0, %s162
      %s179 = sphi 0, %s163
      %s183 = sphi 0, %s183
      %s185 = sphi 0, %s183
      %s186 = sphi 0, %s185
      %s200 = sphi 0, %s186
      %s204 = sphi 0, %s204
      %s206 = sphi 0, %s204
      %s207 = sphi 0, %s206
      %s221 = sphi 0, %s207
      %s225 = sphi 0, %s225
      %s227 = sphi 0, %s225
      %s228 = sphi 0, %s227
      %s242 = sphi 0, %s228
    $region4: #{lif_r_simulate.1} parent=1 // loop_header_branch
      %21 = sbr.rel (%p19) target = $region8
    $region5: #{lif_r_simulate.1} parent=1 // loop_body
      %s23 = ssub.s32 %s18, 1
      %s24 = ssub.s32 %s18, 2
      %s25 = sadd.s32 %s18, 1
      %s26 = ssub.s32 %s18, %s25
      %p27 = scmp.eq.s32.totalorder %s26, 0
      %s29 = sadd.s32 %s28, 1
      %s30 = scalar_select %p27, %s28, %s29
      %p33 = pneg %p27
      %p34 = scmp.eq.s32.totalorder %s18, 2
      %p35 = por %p33, %p34
      %p36 = scmp.ne.s32.totalorder %s28, %s31
      %p37 = scmp.eq.s32.totalorder %s18, 0
      %p38 = por %p36, %p37
      %p39 = scmp.ne.s32.totalorder %s28, %s31
      %p40 = scmp.eq.s32.totalorder %s23, 2
      %p41 = por %p39, %p40
      %p42 = scmp.ne.s32.totalorder %s31, %s32
      %p43 = scmp.eq.s32.totalorder %s23, 0
      %p44 = por %p42, %p43
      %p45 = scmp.ne.s32.totalorder %s31, %s32
      %p46 = scmp.eq.s32.totalorder %s24, 2
      %p47 = por %p45, %p46
      %p49 = scmp.ne.s32.totalorder %s32, %s48
      %p50 = scmp.eq.s32.totalorder %s24, 0
      %p51 = por %p49, %p50
      %s53 = sadd.s32 %s52, 1
      %p56 = scmp.eq.s32.totalorder %s18, 2
      %p57 = scmp.ne.s32.totalorder %s52, %s54
      %p58 = scmp.eq.s32.totalorder %s18, 0
      %p59 = por %p57, %p58
      %p60 = scmp.ne.s32.totalorder %s52, %s54
      %p61 = scmp.eq.s32.totalorder %s23, 2
      %p62 = por %p60, %p61
      %p63 = scmp.ne.s32.totalorder %s54, %s55
      %p64 = scmp.eq.s32.totalorder %s23, 0
      %p65 = por %p63, %p64
      %p66 = scmp.ne.s32.totalorder %s54, %s55
      %p67 = scmp.eq.s32.totalorder %s24, 2
      %p68 = por %p66, %p67
      %p70 = scmp.ne.s32.totalorder %s55, %s69
      %p71 = scmp.eq.s32.totalorder %s24, 0
      %p72 = por %p70, %p71
      %s74 = sadd.s32 %s73, 1
      %p77 = scmp.eq.s32.totalorder %s18, 2
      %p78 = scmp.ne.s32.totalorder %s73, %s75
      %p79 = scmp.eq.s32.totalorder %s18, 0
      %p80 = por %p78, %p79
      %p81 = scmp.ne.s32.totalorder %s73, %s75
      %p82 = scmp.eq.s32.totalorder %s23, 2
      %p83 = por %p81, %p82
      %p84 = scmp.ne.s32.totalorder %s75, %s76
      %p85 = scmp.eq.s32.totalorder %s23, 0
      %p86 = por %p84, %p85
      %p87 = scmp.ne.s32.totalorder %s75, %s76
      %p88 = scmp.eq.s32.totalorder %s24, 2
      %p89 = por %p87, %p88
      %p91 = scmp.ne.s32.totalorder %s76, %s90
      %p92 = scmp.eq.s32.totalorder %s24, 0
      %p93 = por %p91, %p92
      %s95 = sadd.s32 %s94, 1
      %p98 = scmp.eq.s32.totalorder %s18, 2
      %p99 = scmp.ne.s32.totalorder %s94, %s96
      %p100 = scmp.eq.s32.totalorder %s18, 0
      %p101 = por %p99, %p100
      %p102 = scmp.ne.s32.totalorder %s94, %s96
      %p103 = scmp.eq.s32.totalorder %s23, 2
      %p104 = por %p102, %p103
      %p105 = scmp.ne.s32.totalorder %s96, %s97
      %p106 = scmp.eq.s32.totalorder %s23, 0
      %p107 = por %p105, %p106
      %p108 = scmp.ne.s32.totalorder %s96, %s97
      %p109 = scmp.eq.s32.totalorder %s24, 2
      %p110 = por %p108, %p109
      %p112 = scmp.ne.s32.totalorder %s97, %s111
      %p113 = scmp.eq.s32.totalorder %s24, 0
      %p114 = por %p112, %p113
      %s116 = sadd.s32 %s115, 1
      %p119 = scmp.eq.s32.totalorder %s18, 2
      %p120 = scmp.ne.s32.totalorder %s115, %s117
      %p121 = scmp.eq.s32.totalorder %s18, 0
      %p122 = por %p120, %p121
      %p123 = scmp.ne.s32.totalorder %s115, %s117
      %p124 = scmp.eq.s32.totalorder %s23, 2
      %p125 = por %p123, %p124
      %p126 = scmp.ne.s32.totalorder %s117, %s118
      %p127 = scmp.eq.s32.totalorder %s23, 0
      %p128 = por %p126, %p127
      %p129 = scmp.ne.s32.totalorder %s117, %s118
      %p130 = scmp.eq.s32.totalorder %s24, 2
      %p131 = por %p129, %p130
      %p133 = scmp.ne.s32.totalorder %s118, %s132
      %p134 = scmp.eq.s32.totalorder %s24, 0
      %p135 = por %p133, %p134
      %s137 = sadd.s32 %s136, 1
      %p140 = scmp.eq.s32.totalorder %s18, 2
      %p141 = scmp.ne.s32.totalorder %s136, %s138
      %p142 = scmp.eq.s32.totalorder %s18, 0
      %p143 = por %p141, %p142
      %p144 = scmp.ne.s32.totalorder %s136, %s138
      %p145 = scmp.eq.s32.totalorder %s23, 2
      %p146 = por %p144, %p145
      %p147 = scmp.ne.s32.totalorder %s138, %s139
      %p148 = scmp.eq.s32.totalorder %s23, 0
      %p149 = por %p147, %p148
      %p150 = scmp.ne.s32.totalorder %s138, %s139
      %p151 = scmp.eq.s32.totalorder %s24, 2
      %p152 = por %p150, %p151
      %p154 = scmp.ne.s32.totalorder %s139, %s153
      %p155 = scmp.eq.s32.totalorder %s24, 0
      %p156 = por %p154, %p155
      %s157 = ssub.s32 %s18, %s25
      %p158 = scmp.eq.s32.totalorder %s157, 0
      %s160 = sadd.s32 %s159, 1
      %s161 = scalar_select %p158, %s159, %s160
      %p164 = pneg %p158
      %p165 = scmp.eq.s32.totalorder %s18, 2
      %p166 = por %p164, %p165
      %p167 = scmp.ne.s32.totalorder %s159, %s162
      %p168 = scmp.eq.s32.totalorder %s18, 0
      %p169 = por %p167, %p168
      %p170 = scmp.ne.s32.totalorder %s159, %s162
      %p171 = scmp.eq.s32.totalorder %s23, 2
      %p172 = por %p170, %p171
      %p173 = scmp.ne.s32.totalorder %s162, %s163
      %p174 = scmp.eq.s32.totalorder %s23, 0
      %p175 = por %p173, %p174
      %p176 = scmp.ne.s32.totalorder %s162, %s163
      %p177 = scmp.eq.s32.totalorder %s24, 2
      %p178 = por %p176, %p177
      %p180 = scmp.ne.s32.totalorder %s163, %s179
      %p181 = scmp.eq.s32.totalorder %s24, 0
      %p182 = por %p180, %p181
      %s184 = sadd.s32 %s183, 1
      %p187 = scmp.eq.s32.totalorder %s18, 2
      %p188 = scmp.ne.s32.totalorder %s183, %s185
      %p189 = scmp.eq.s32.totalorder %s18, 0
      %p190 = por %p188, %p189
      %p191 = scmp.ne.s32.totalorder %s183, %s185
      %p192 = scmp.eq.s32.totalorder %s23, 2
      %p193 = por %p191, %p192
      %p194 = scmp.ne.s32.totalorder %s185, %s186
      %p195 = scmp.eq.s32.totalorder %s23, 0
      %p196 = por %p194, %p195
      %p197 = scmp.ne.s32.totalorder %s185, %s186
      %p198 = scmp.eq.s32.totalorder %s24, 2
      %p199 = por %p197, %p198
      %p201 = scmp.ne.s32.totalorder %s186, %s200
      %p202 = scmp.eq.s32.totalorder %s24, 0
      %p203 = por %p201, %p202
      %s205 = sadd.s32 %s204, 1
      %p208 = scmp.eq.s32.totalorder %s18, 2
      %p209 = scmp.ne.s32.totalorder %s204, %s206
      %p210 = scmp.eq.s32.totalorder %s18, 0
      %p211 = por %p209, %p210
      %p212 = scmp.ne.s32.totalorder %s204, %s206
      %p213 = scmp.eq.s32.totalorder %s23, 2
      %p214 = por %p212, %p213
      %p215 = scmp.ne.s32.totalorder %s206, %s207
      %p216 = scmp.eq.s32.totalorder %s23, 0
      %p217 = por %p215, %p216
      %p218 = scmp.ne.s32.totalorder %s206, %s207
      %p219 = scmp.eq.s32.totalorder %s24, 2
      %p220 = por %p218, %p219
      %p222 = scmp.ne.s32.totalorder %s207, %s221
      %p223 = scmp.eq.s32.totalorder %s24, 0
      %p224 = por %p222, %p223
      %s226 = sadd.s32 %s225, 1
      %p229 = scmp.eq.s32.totalorder %s18, 2
      %p230 = scmp.ne.s32.totalorder %s225, %s227
      %p231 = scmp.eq.s32.totalorder %s18, 0
      %p232 = por %p230, %p231
      %p233 = scmp.ne.s32.totalorder %s225, %s227
      %p234 = scmp.eq.s32.totalorder %s23, 2
      %p235 = por %p233, %p234
      %p236 = scmp.ne.s32.totalorder %s227, %s228
      %p237 = scmp.eq.s32.totalorder %s23, 0
      %p238 = por %p236, %p237
      %p239 = scmp.ne.s32.totalorder %s227, %s228
      %p240 = scmp.eq.s32.totalorder %s24, 2
      %p241 = por %p239, %p240
      %p243 = scmp.ne.s32.totalorder %s228, %s242
      %p244 = scmp.eq.s32.totalorder %s24, 0
      %p245 = por %p243, %p244
      %p246 = scmp.le.s32.totalorder 1, %s18
      %p247 = scmp.lt.s32.totalorder %s18, 4
      %p248 = pnand %p246, %p247
      %p249 = pneg %p248
      // Predicated region
      $region9: #{lif_r_simulate.1} parent=5 // pred_check
        _
      $region10: #{lif_r_simulate.1} parent=5 // pred_check_branch
        %251 = sbr.rel (%p248) target = $region12
      $region11: #{lif_r_simulate.1} parent=5 // pred_region
        %s252 = ssub.s32 %s18, 1
        // Predicated region
        $region13: #{lif_r_simulate.1} parent=11 // pred_check
          %p253 = pneg %p65
        $region14: #{lif_r_simulate.1} parent=11 // pred_check_branch
          %255 = sbr.rel (%p253) target = $region16
        $region15: #{lif_r_simulate.1} parent=11 // pred_region
          _
        $region16: #{lif_r_simulate.1} parent=11 // pred_fallthru
          _
        // Predicated region
        $region17: #{lif_r_simulate.1} parent=11 // pred_check
          %p256 = pneg %p86
        $region18: #{lif_r_simulate.1} parent=11 // pred_check_branch
          %258 = sbr.rel (%p256) target = $region20
        $region19: #{lif_r_simulate.1} parent=11 // pred_region
          _
        $region20: #{lif_r_simulate.1} parent=11 // pred_fallthru
          _
        // Predicated region
        $region21: #{lif_r_simulate.1} parent=11 // pred_check
          %p259 = pneg %p107
        $region22: #{lif_r_simulate.1} parent=11 // pred_check_branch
          %261 = sbr.rel (%p259) target = $region24
        $region23: #{lif_r_simulate.1} parent=11 // pred_region
          _
        $region24: #{lif_r_simulate.1} parent=11 // pred_fallthru
          _
        // Predicated region
        $region25: #{lif_r_simulate.1} parent=11 // pred_check
          %p262 = pneg %p128
        $region26: #{lif_r_simulate.1} parent=11 // pred_check_branch
          %264 = sbr.rel (%p262) target = $region28
        $region27: #{lif_r_simulate.1} parent=11 // pred_region
          _
        $region28: #{lif_r_simulate.1} parent=11 // pred_fallthru
          _
        // Predicated region
        $region29: #{lif_r_simulate.1} parent=11 // pred_check
          %p265 = pneg %p149
        $region30: #{lif_r_simulate.1} parent=11 // pred_check_branch
          %267 = sbr.rel (%p265) target = $region32
        $region31: #{lif_r_simulate.1} parent=11 // pred_region
          _
        $region32: #{lif_r_simulate.1} parent=11 // pred_fallthru
          _
      $region12: #{lif_r_simulate.1} parent=5 // pred_fallthru
        _
      %p268 = scmp.lt.s32.totalorder %s18, 3
      // Predicated region
      $region33: #{lif_r_simulate.1} parent=5 // pred_check
        %p269 = pneg %p268
      $region34: #{lif_r_simulate.1} parent=5 // pred_check_branch
        %271 = sbr.rel (%p269) target = $region36
      $region35: #{lif_r_simulate.1} parent=5 // pred_region
        // Predicated region
        $region37: #{lif_r_simulate.1} parent=35 // pred_check
          %p272 = pneg %p38
        $region38: #{lif_r_simulate.1} parent=35 // pred_check_branch
          %274 = sbr.rel (%p272) target = $region40
        $region39: #{lif_r_simulate.1} parent=35 // pred_region
          %s275 = smul.u32 8, %s18
          %p276 = scmp.lt.s32.totalorder %s275, 23
          %s277 = scalar_select %p276, %s275, 23
          %s278 = smul.addr %s277, 8
          %s279 = scalar_lea.vmem %s0, %s278
          %s280 = smul.u32 8, %s18
        $region40: #{lif_r_simulate.1} parent=35 // pred_fallthru
          _
      $region36: #{lif_r_simulate.1} parent=5 // pred_fallthru
        _
      %p281 = scmp.le.s32.totalorder 1, %s18
      %p282 = scmp.lt.s32.totalorder %s18, 4
      %p283 = pnand %p281, %p282
      %p284 = pneg %p283
      // Predicated region
      $region41: #{lif_r_simulate.1} parent=5 // pred_check
        _
      $region42: #{lif_r_simulate.1} parent=5 // pred_check_branch
        %286 = sbr.rel (%p283) target = $region44
      $region43: #{lif_r_simulate.1} parent=5 // pred_region
        %s287 = ssub.s32 %s18, 1
        %s288 = smul.u32 8, %s23
        %p289 = scmp.lt.s32.totalorder %s288, 23
        %s290 = scalar_select %p289, %s288, 23
        %s291 = smul.addr %s290, 8
        %s292 = scalar_lea.vmem %s0, %s291
        %p293 = pneg %p44
        %p294 = pneg %p41
        %p295 = pneg %p65
        %p296 = pneg %p62
        %p297 = pneg %p86
        %p298 = pneg %p83
        %p299 = pneg %p107
        %p300 = pneg %p104
        %p301 = pneg %p128
        %p302 = pneg %p125
        %p303 = pneg %p149
        %p304 = pneg %p146
        %p305 = pneg %p175
        %p306 = pneg %p172
        %s307 = smul.u32 8, %s23
        %p308 = scmp.lt.s32.totalorder %s307, 23
        %s309 = scalar_select %p308, %s307, 23
        %s310 = smul.addr %s309, 8
        %s311 = scalar_lea.vmem %s6, %s310
        %p312 = pneg %p196
        %p313 = pneg %p193
        %p314 = pneg %p217
        %p315 = pneg %p214
        %p316 = pneg %p238
        %p317 = pneg %p235
        %s318 = smul.u32 8, %s23
        %p319 = scmp.lt.s32.totalorder %s318, 23
        %s320 = scalar_select %p319, %s318, 23
        %s321 = smul.addr %s320, 8
        %s322 = scalar_lea.vmem %s0, %s321
        %s323 = smul.u32 8, %s23
        %s324 = smul.u32 8, %s23
        %p325 = scmp.lt.s32.totalorder %s324, 23
        %s326 = scalar_select %p325, %s324, 23
        %s327 = smul.addr %s326, 8
        %s328 = scalar_lea.vmem %s6, %s327
        %s329 = smul.u32 8, %s23
        %p330 = scmp.eq.s32.totalorder %s23, 0
        // Predicated region
        $region45: #{lif_r_simulate.1} parent=43 // pred_check
          %p331 = pneg %p330
        $region46: #{lif_r_simulate.1} parent=43 // pred_check_branch
          %333 = sbr.rel (%p331) target = $region48
        $region47: #{lif_r_simulate.1} parent=43 // pred_region
          %v334 = vld [vmem:[%s3] sm:$0xff]
          %335 = vst [vmem:[#allocation2] sm:$0xff] %v334
          %v336 = vld [vmem:[%s4] sm:$0xff]
          %337 = vst [vmem:[#allocation4] sm:$0xff] %v336
          %v338 = vld [vmem:[%s5] sm:$0xff]
          %339 = vst [vmem:[#allocation6] sm:$0xff] %v338
        $region48: #{lif_r_simulate.1} parent=43 // pred_fallthru
          _
        %v340 = vld [vmem:[%s2] sm:$0x1]
        %v341 = vlaneseq
        %v342 = vshrl.u32 %v341, 7
        %v343 = vsub.s32 0, %v342
        %v344 = vrot.slane %v340, %v343
        %v345 = vld [vmem:[%s2 + $0x1] sm:$0x1]
        %v346 = vlaneseq
        %v347 = vshrl.u32 %v346, 7
        %v348 = vsub.s32 0, %v347
        %v349 = vrot.slane %v345, %v348
        %v350 = vld [vmem:[%s2 + $0x2] sm:$0x1]
        %v351 = vlaneseq
        %v352 = vshrl.u32 %v351, 7
        %v353 = vsub.s32 0, %v352
        %v354 = vrot.slane %v350, %v353
        %v355 = vld [vmem:[%s2 + $0x3] sm:$0x1]
        %v356 = vlaneseq
        %v357 = vshrl.u32 %v356, 7
        %v358 = vsub.s32 0, %v357
        %v359 = vrot.slane %v355, %v358
        %v360 = vld [vmem:[%s2 + $0x4] sm:$0x1]
        %v361 = vlaneseq
        %v362 = vshrl.u32 %v361, 7
        %v363 = vsub.s32 0, %v362
        %v364 = vrot.slane %v360, %v363
        %v365 = vld [vmem:[%s2 + $0x5] sm:$0x1]
        %v366 = vlaneseq
        %v367 = vshrl.u32 %v366, 7
        %v368 = vsub.s32 0, %v367
        %v369 = vrot.slane %v365, %v368
        %v370 = vld [vmem:[%s2 + $0x6] sm:$0x1]
        %v371 = vlaneseq
        %v372 = vshrl.u32 %v371, 7
        %v373 = vsub.s32 0, %v372
        %v374 = vrot.slane %v370, %v373
        %v375 = vld [vmem:[%s2 + $0x7] sm:$0x1]
        %v376 = vlaneseq
        %v377 = vshrl.u32 %v376, 7
        %v378 = vsub.s32 0, %v377
        %v379 = vrot.slane %v375, %v378
        %v380 = vld [vmem:[%s2 + $0x8] sm:$0x1]
        %v381 = vlaneseq
        %v382 = vshrl.u32 %v381, 7
        %v383 = vsub.s32 0, %v382
        %v384 = vrot.slane %v380, %v383
        %s385 = smul.u32 %s23, 8
        %s386 = ssub.s32 20, %s385
        %p387 = scmp.lt.s32.totalorder %s386, 8
        %s388 = scalar_select %p387, %s386, 8
        // While loop
        $region49: #{lif_r_simulate.1} parent=43 // loop_pre_header
          _
        $region50: #{lif_r_simulate.1} parent=43 // loop_header
          %s390 = sphi 0, %s392
          %p391 = scmp.ge.s32.totalorder %s390, %s388
        $region51: #{lif_r_simulate.1} parent=43 // loop_header_branch
          %394 = sbr.rel (%p391) target = $region55
        $region52: #{lif_r_simulate.1} parent=43 // loop_body
          %v395 = vld [vmem:[#allocation2] sm:$0xff]
          %v396 = vld [vmem:[#allocation4] sm:$0xff]
          %v397 = vld [vmem:[#allocation6] sm:$0xff]
          %s398 = smul.u32 %s390, 8
          %s399 = scalar_lea.vmem %s322, %s398
          %v400 = vld [vmem:[%s399] sm:$0xff]
          %v401 = vld [vmem:[%s1] sm:$0xff]
          %v402 = vld [vmem:[%s1 + $0x8] sm:$0xff]
          %v403 = vld [vmem:[%s1 + $0x10] sm:$0xff]
          %v404 = vld [vmem:[%s1 + $0x18] sm:$0xff]
          %v405 = vld [vmem:[%s1 + $0x20] sm:$0xff]
          %v406 = vld [vmem:[%s1 + $0x28] sm:$0xff]
          %v407 = vld [vmem:[%s1 + $0x30] sm:$0xff]
          %v408 = vld [vmem:[%s1 + $0x38] sm:$0xff]
          %v409 = vld [vmem:[%s1 + $0x40] sm:$0xff]
          %v410 = vld [vmem:[%s1 + $0x48] sm:$0xff]
          %v411 = vld [vmem:[%s1 + $0x50] sm:$0xff]
          %v412 = vld [vmem:[%s1 + $0x58] sm:$0xff]
          %v413 = vld [vmem:[%s1 + $0x60] sm:$0xff]
          %v414 = vld [vmem:[%s1 + $0x68] sm:$0xff]
          %v415 = vld [vmem:[%s1 + $0x70] sm:$0xff]
          %v416 = vld [vmem:[%s1 + $0x78] sm:$0xff]
          %v417 = vsub.f32 %v344, %v395
          %v418 = vmul.f32 %v349, %v417
          %419 = vmatprep.subr.mxu0 0.0
          %420 = vmatpush1.msra.mxu0 %v401
          %421 = vmatprep.subr.mxu0 0.0
          %422 = vmatpush1.msra.mxu0 %v402
          %423 = vmatprep.subr.mxu0 0.0
          %424 = vmatpush1.msra.mxu0 %v403
          %425 = vmatprep.subr.mxu0 0.0
          %426 = vmatpush1.msra.mxu0 %v404
          %427 = vmatprep.subr.mxu0 0.0
          %428 = vmatpush1.msra.mxu0 %v405
          %429 = vmatprep.subr.mxu0 0.0
          %430 = vmatpush1.msra.mxu0 %v406
          %431 = vmatprep.subr.mxu0 0.0
          %432 = vmatpush1.msra.mxu0 %v407
          %433 = vmatprep.subr.mxu0 0.0
          %434 = vmatpush1.msra.mxu0 %v408
          %435 = vmatprep.subr.mxu0 0.0
          %436 = vmatpush1.msra.mxu0 %v409
          %437 = vmatprep.subr.mxu0 0.0
          %438 = vmatpush1.msra.mxu0 %v410
          %439 = vmatprep.subr.mxu0 0.0
          %440 = vmatpush1.msra.mxu0 %v411
          %441 = vmatprep.subr.mxu0 0.0
          %442 = vmatpush1.msra.mxu0 %v412
          %443 = vmatprep.subr.mxu0 0.0
          %444 = vmatpush1.msra.mxu0 %v413
          %445 = vmatprep.subr.mxu0 0.0
          %446 = vmatpush1.msra.mxu0 %v414
          %447 = vmatprep.subr.mxu0 0.0
          %448 = vmatpush1.msra.mxu0 %v415
          %449 = vmatprep.subr.mxu0 0.0
          %450 = vmatpush1.msra.mxu0 %v416
          %451 = vmatprep.subr.mxu0 0.0
          %452 = vmatpush1.msra.mxu0 0.0
          %453 = vmatprep.subr.mxu0 0.0
          %454 = vmatpush1.msra.mxu0 0.0
          %455 = vmatprep.subr.mxu0 0.0
          %456 = vmatpush1.msra.mxu0 0.0
          %457 = vmatprep.subr.mxu0 0.0
          %458 = vmatpush1.msra.mxu0 0.0
          %459 = vmatprep.subr.mxu0 0.0
          %460 = vmatpush1.msra.mxu0 0.0
          %461 = vmatprep.subr.mxu0 0.0
          %462 = vmatpush1.msra.mxu0 0.0
          %463 = vmatprep.subr.mxu0 0.0
          %464 = vmatpush1.msra.mxu0 0.0
          %465 = vmatprep.subr.mxu0 0.0
          %466 = vmatpush1.msra.mxu0 0.0
          %467 = vmatprep.subr.mxu0 0.0
          %468 = vmatpush1.msra.mxu0 0.0
          %469 = vmatprep.subr.mxu0 0.0
          %470 = vmatpush1.msra.mxu0 0.0
          %471 = vmatprep.subr.mxu0 0.0
          %472 = vmatpush1.msra.mxu0 0.0
          %473 = vmatprep.subr.mxu0 0.0
          %474 = vmatpush1.msra.mxu0 0.0
          %475 = vmatprep.subr.mxu0 0.0
          %476 = vmatpush1.msra.mxu0 0.0
          %477 = vmatprep.subr.mxu0 0.0
          %478 = vmatpush1.msra.mxu0 0.0
          %479 = vmatprep.subr.mxu0 0.0
          %480 = vmatpush1.msra.mxu0 0.0
          %481 = vmatprep.subr.mxu0 0.0
          %482 = vmatpush1.msra.mxu0 0.0
          %483 = vmatprep.mubr.f32.mxu0 0.0
          %484 = vmatmul.mubr.f32.gmra.mrb[0].mxu0 %v396
          %v485 = vpop.f32.mrb[0].mxu0
          %v486 = vadd.f32 %v400, %v485
          %v487 = vpop.f32.mrb[0].mxu0
          %488 = vdwg.mxu0
          %v489 = vmul.f32 %v486, %v384
          %v490 = vadd.f32 %v418, %v489
          %v491 = vmul.f32 %v490, %v354
          %v492 = vadd.f32 %v395, %v491
          %v493 = vrcp.pop %v397
          %v494 = vmul.f32 %v492, %v493
          %v495 = vmax.f32 %v494, 0.0
          %v496 = vmin.f32 %v495, 1.0
          %v497 = vsub.f32 0.0, %v396
          %v498 = vsub.f32 %v397, %v344
          %v499 = vrcp.pop %v498
          %v500 = vmul.f32 %v491, %v499
          %v501 = vmax.f32 %v500, 0.0
          %v502 = vmin.f32 %v501, 1.0
          %v503 = vmul.f32 %v496, %v502
          %v504 = vadd.f32 %v497, %v503
          %v505 = vmul.f32 %v504, %v359
          %vm506 = vcmp.ge.f32.partialorder %v492, %v397
          %v507 = vmul.f32 %v364, %v397
          %v508 = vadd.f32 %v507, %v369
          %v509 = vsel %vm506, %v508, %v507
          %v510 = vsub.f32 %v395, %v344
          %v511 = vmul.f32 %v374, %v510
          %v512 = vadd.f32 %v344, %v511
          %v513 = vsub.f32 %v512, %v379
          %v514 = vsub.f32 %v492, %v509
          %v515 = vxor.u32 %v514, 2147483648
          %v516 = vmul.f32 %v515, 1.442695
          %v517 = vpow.pop %v516
          %v518 = vadd.f32 %v517, 1.0
          %v519 = vrcp.pop %v518
          %v520 = vmul.f32 1.0, %v519
          %s521 = scalar_lea.vmem %s328, %s398
          %522 = vst [vmem:[%s521] sm:$0xff] %v520
          %v523 = vsel %vm506, %v513, %v492
          %524 = vst [vmem:[#allocation2] sm:$0xff] %v523
          %v525 = vadd.f32 %v396, %v505
          %526 = vst [vmem:[#allocation4] sm:$0xff] %v525
          %527 = vst [vmem:[#allocation6] sm:$0xff] %v509
        $region53: #{lif_r_simulate.1} parent=43 // loop_footer
          %s392 = sadd.s32 %s390, 1
        $region54: #{lif_r_simulate.1} parent=43 // loop_footer_branch
          %389 = sbr.rel target = $region50
        $region55: #{lif_r_simulate.1} parent=43 // loop_exit
          _
        %s528 = smul.u32 8, %s23
        %p529 = scmp.lt.s32.totalorder %s528, 23
        %s530 = scalar_select %p529, %s528, 23
        %s531 = smul.addr %s530, 8
        %s532 = scalar_lea.vmem %s6, %s531
        // Predicated region
        $region56: #{lif_r_simulate.1} parent=43 // pred_check
          %p533 = pneg %p172
        $region57: #{lif_r_simulate.1} parent=43 // pred_check_branch
          %535 = sbr.rel (%p533) target = $region59
        $region58: #{lif_r_simulate.1} parent=43 // pred_region
          %s536 = smul.u32 8, %s23
        $region59: #{lif_r_simulate.1} parent=43 // pred_fallthru
          _
        // Predicated region
        $region60: #{lif_r_simulate.1} parent=43 // pred_check
          %p537 = pneg %p193
        $region61: #{lif_r_simulate.1} parent=43 // pred_check_branch
          %539 = sbr.rel (%p537) target = $region63
        $region62: #{lif_r_simulate.1} parent=43 // pred_region
          %s541 = ssub.s32 128, 128
          %542 = vsyncadd [#allocation3], %s541
          %s544 = sshll.u32 [#allocation2], 4
          %s545 = int_to_ptr.vmem [resolvable:$true] %s544
          %547 = dma.vmem_to_hbm [thread:$0]  %s545, 128, %s7, [#allocation3]
        $region63: #{lif_r_simulate.1} parent=43 // pred_fallthru
          _
        // Predicated region
        $region64: #{lif_r_simulate.1} parent=43 // pred_check
          %p548 = pneg %p214
        $region65: #{lif_r_simulate.1} parent=43 // pred_check_branch
          %550 = sbr.rel (%p548) target = $region67
        $region66: #{lif_r_simulate.1} parent=43 // pred_region
          %s552 = ssub.s32 128, 128
          %553 = vsyncadd [#allocation5], %s552
          %s555 = sshll.u32 [#allocation4], 4
          %s556 = int_to_ptr.vmem [resolvable:$true] %s555
          %558 = dma.vmem_to_hbm [thread:$0]  %s556, 128, %s8, [#allocation5]
        $region67: #{lif_r_simulate.1} parent=43 // pred_fallthru
          _
        // Predicated region
        $region68: #{lif_r_simulate.1} parent=43 // pred_check
          %p559 = pneg %p235
        $region69: #{lif_r_simulate.1} parent=43 // pred_check_branch
          %561 = sbr.rel (%p559) target = $region71
        $region70: #{lif_r_simulate.1} parent=43 // pred_region
          %s563 = ssub.s32 128, 128
          %564 = vsyncadd [#allocation5], %s563
          %s566 = sshll.u32 [#allocation6], 4
          %s567 = int_to_ptr.vmem [resolvable:$true] %s566
          %569 = dma.vmem_to_hbm [thread:$0]  %s567, 128, %s9, [#allocation5]
        $region71: #{lif_r_simulate.1} parent=43 // pred_fallthru
          _
        // Predicated region
        $region72: #{lif_r_simulate.1} parent=43 // pred_check
          %p570 = pneg %p193
        $region73: #{lif_r_simulate.1} parent=43 // pred_check_branch
          %572 = sbr.rel (%p570) target = $region75
        $region74: #{lif_r_simulate.1} parent=43 // pred_region
          %573 = dma.done [#allocation3], 128
        $region75: #{lif_r_simulate.1} parent=43 // pred_fallthru
          _
        // Predicated region
        $region76: #{lif_r_simulate.1} parent=43 // pred_check
          %p574 = pneg %p214
        $region77: #{lif_r_simulate.1} parent=43 // pred_check_branch
          %576 = sbr.rel (%p574) target = $region79
        $region78: #{lif_r_simulate.1} parent=43 // pred_region
          %577 = dma.done [#allocation5], 128
        $region79: #{lif_r_simulate.1} parent=43 // pred_fallthru
          _
        // Predicated region
        $region80: #{lif_r_simulate.1} parent=43 // pred_check
          %p578 = pneg %p235
        $region81: #{lif_r_simulate.1} parent=43 // pred_check_branch
          %580 = sbr.rel (%p578) target = $region83
        $region82: #{lif_r_simulate.1} parent=43 // pred_region
          %581 = dma.done [#allocation5], 128
        $region83: #{lif_r_simulate.1} parent=43 // pred_fallthru
          _
      $region44: #{lif_r_simulate.1} parent=5 // pred_fallthru
        _
      %p582 = scmp.le.s32.totalorder 2, %s18
      // Predicated region
      $region84: #{lif_r_simulate.1} parent=5 // pred_check
        %p583 = pneg %p582
      $region85: #{lif_r_simulate.1} parent=5 // pred_check_branch
        %585 = sbr.rel (%p583) target = $region87
      $region86: #{lif_r_simulate.1} parent=5 // pred_region
        %s586 = ssub.s32 %s18, 2
        // Predicated region
        $region88: #{lif_r_simulate.1} parent=86 // pred_check
          %p587 = pneg %p178
        $region89: #{lif_r_simulate.1} parent=86 // pred_check_branch
          %589 = sbr.rel (%p587) target = $region91
        $region90: #{lif_r_simulate.1} parent=86 // pred_region
          %s590 = smul.u32 8, %s24
          %p591 = scmp.lt.s32.totalorder %s590, 23
          %s592 = scalar_select %p591, %s590, 23
          %s593 = smul.addr %s592, 8
          %s594 = scalar_lea.vmem %s6, %s593
        $region91: #{lif_r_simulate.1} parent=86 // pred_fallthru
          _
      $region87: #{lif_r_simulate.1} parent=5 // pred_fallthru
        _
    $region6: #{lif_r_simulate.1} parent=1 // loop_footer
      %s22 = sadd.s32 1, %s18
    $region7: #{lif_r_simulate.1} parent=1 // loop_footer_branch
      %17 = sbr.rel target = $region3
    $region8: #{lif_r_simulate.1} parent=1 // loop_exit
      _
    %595 = vsyncpa [#allocation3], 1
    %s596 = scalar_lea.sflag [#allocation3], 1
    %597 = vsyncpa %s596, 1
    %598 = vsyncpa [#allocation5], 1

</llo_original>
